<compile_context>
chip_gen: v6e
topology: v6e:2x2x1
jax: 0.10.0
libtpu: 0.0.40
codegen_flags: <defaults>
</compile_context>

<pallas_src>
import jax
import jax.numpy as jnp
from jax.experimental import pallas as pl
from jax.experimental.pallas import tpu as pltpu

HID_SIZE = 64
LANE = 128  # TPU lane width


def _round_up(n, m):
    return ((n + m - 1) // m) * m


def actor_mlp_kernel(x_ref, w1_ref, w2_ref, w3_ref, b_ref, o_ref):
    # Layer 1: Linear + ReLU (MXU matmul, f32 accumulate, f32 VPU max).
    h = jnp.dot(x_ref[...].astype(w1_ref.dtype), w1_ref[...],
                preferred_element_type=jnp.float32)
    h = jnp.maximum(h + b_ref[0:1, :], 0.0)
    # Layer 2: Linear + ReLU.
    h = jnp.dot(h.astype(w2_ref.dtype), w2_ref[...],
                preferred_element_type=jnp.float32)
    h = jnp.maximum(h + b_ref[1:2, :], 0.0)
    # Layer 3: Linear + Tanh (EUP).  Store only the columns the output wants:
    # if o_ref is narrow (act_size) this is a masked store of the first
    # act_size lanes; if o_ref is lane-dense (P) the slice is a no-op.
    h = jnp.dot(h.astype(w3_ref.dtype), w3_ref[...],
                preferred_element_type=jnp.float32)
    y = jnp.tanh(h + b_ref[2:3, :])
    o_ref[...] = y[:, :o_ref.shape[-1]].astype(o_ref.dtype)


def prepare_actor_params(params, *, weight_dtype=jnp.bfloat16):
    """Pad/pack raw params once. Hidden & act dims padded to a common multiple
    of 128 (P); biases stacked into one (3, P) f32 array.

    Zero padding is exact: padded hidden units see ReLU(0+0)=0 and padded
    weight rows are zero, so they contribute nothing; padded outputs are
    tanh(0)=0 and are dropped by the narrow store / wrapper slice.
    """
    w1, b1 = params["w1"], params["b1"]
    w2, b2 = params["w2"], params["b2"]
    w3, b3 = params["w3"], params["b3"]
    obs_size, H = w1.shape
    act_size = w3.shape[1]
    P = max(_round_up(H, LANE), _round_up(act_size, LANE))

    def pad_w(w, rows, cols):
        return jnp.pad(
            w, ((0, rows - w.shape[0]), (0, cols - w.shape[1]))
        ).astype(weight_dtype)

    def pad_b(b):
        b = jnp.reshape(b, (1, -1))
        return jnp.pad(b, ((0, 0), (0, P - b.shape[1])))

    return {
        "w1": pad_w(w1, obs_size, P),   # [obs, P]
        "w2": pad_w(w2, P, P),          # [P, P]
        "w3": pad_w(w3, P, P),          # [P, P]
        # Biases stay f32 (added after f32 accumulation; f32 elementwise on VPU).
        "bias": jnp.concatenate([pad_b(b1), pad_b(b2), pad_b(b3)],
                                axis=0).astype(jnp.float32),  # [3, P]
        "obs_size": obs_size,
        "act_size": act_size,
        "pad": P,
    }


def _pick_batch_tile(B):
    """Batch tile: single block only for small B; >=2 (ideally >=4) grid steps
    otherwise so v7x's two TensorCores and the DMA pipeline have work; 512-1024
    row tiles for very large B (near HBM roofline, tiny per-step overhead)."""
    if B <= 512:
        return B                               # block == full array is legal
    if B < 1024:
        return _round_up(pl.cdiv(B, 2), 8)     # >= 2 grid steps
    return min(1024, _round_up(pl.cdiv(B, 4), 8))  # >= 4 grid steps, tb <= 1024


def model_actor_forward(x, prepared, *, batch_tile=None, lane_dense_output=False):
    """Run the fused actor MLP.

    x: [B, obs_size]; prepared: prepare_actor_params().
    Returns [B, act_size] (tanh mu), matching the PyTorch forward.
    """
    B, obs_size = x.shape
    assert obs_size == prepared["obs_size"]
    P = prepared["pad"]
    act_size = prepared["act_size"]

    if batch_tile is not None:
        tb = batch_tile
        assert tb == B or tb % 8 == 0, "batch_tile must be a multiple of 8"
    else:
        tb = _pick_batch_tile(B)

    # Pad the batch up to a tile multiple (zeros); extra rows are sliced off.
    Bp = _round_up(B, tb)
    x_in = x if Bp == B else jnp.pad(x, ((0, Bp - B), (0, 0)))
    grid = (Bp // tb,)

    out_cols = P if lane_dense_output else act_size

    out = pl.pallas_call(
        actor_mlp_kernel,
        out_shape=jax.ShapeDtypeStruct((Bp, out_cols), x.dtype),
        grid_spec=pl.GridSpec(
            grid=grid,
            in_specs=[
                pl.BlockSpec((tb, obs_size), lambda i: (i, 0)),   # x tile
                pl.BlockSpec((obs_size, P), lambda i: (0, 0)),    # w1 (resident)
                pl.BlockSpec((P, P), lambda i: (0, 0)),           # w2 (resident)
                pl.BlockSpec((P, P), lambda i: (0, 0)),           # w3 (resident)
                pl.BlockSpec((3, P), lambda i: (0, 0)),           # packed biases
            ],
            out_specs=pl.BlockSpec((tb, out_cols), lambda i: (i, 0)),
        ),
        compiler_params=pltpu.CompilerParams(
            dimension_semantics=("parallel",),  # batch grid shards across v7x TCs
        ),
    )(x_in, prepared["w1"], prepared["w2"], prepared["w3"], prepared["bias"])

    if Bp != B:
        out = out[:B]
    if lane_dense_output:
        out = out[:, :act_size]
    return out


def init_params(key, obs_size, act_size, hid=HID_SIZE, dtype=jnp.float32):
    """Deterministic synthetic parameters (PyTorch-Linear-like uniform init)."""
    ks = jax.random.split(key, 6)

    def linear(kw, kb, fan_in, fan_out):
        bound = 1.0 / jnp.sqrt(fan_in)
        w = jax.random.uniform(kw, (fan_in, fan_out), dtype, -bound, bound)
        b = jax.random.uniform(kb, (1, fan_out), dtype, -bound, bound)
        return w, b

    w1, b1 = linear(ks[0], ks[1], obs_size, hid)
    w2, b2 = linear(ks[2], ks[3], hid, hid)
    w3, b3 = linear(ks[4], ks[5], hid, act_size)
    logstd = jnp.zeros((act_size,), dtype)  # unused in forward (nn.Parameter)
    return {"w1": w1, "b1": b1, "w2": w2, "b2": b2, "w3": w3, "b3": b3,
            "logstd": logstd}


def _reference(x, params):
    h = jnp.maximum(x @ params["w1"] + params["b1"], 0.0)
    h = jnp.maximum(h @ params["w2"] + params["b2"], 0.0)
    return jnp.tanh(h @ params["w3"] + params["b3"])


if __name__ == "__main__":
    key = jax.random.PRNGKey(0)
    k_param, k_x1, k_x2 = jax.random.split(key, 3)

    obs_size = 32
    act_size = 8

    params = init_params(k_param, obs_size, act_size)

    x1 = jax.random.normal(k_x1, (8, obs_size), jnp.float32)
    x2 = jax.random.normal(k_x2, (20, obs_size), jnp.float32)
    ref1 = _reference(x1, params)
    ref2 = _reference(x2, params)

    # --- f32 weights, narrow output, single-block path (small batch) ---
    prepared_f32 = prepare_actor_params(params, weight_dtype=jnp.float32)
    out1 = jax.block_until_ready(model_actor_forward(x1, prepared_f32))
    assert out1.shape == (8, act_size)
    assert jnp.allclose(out1, ref1, atol=1e-5, rtol=1e-5)

    # --- multi-tile grid + batch-padding path (B=20, tile=16 -> Bp=32, grid=2) ---
    out2 = jax.block_until_ready(
        model_actor_forward(x2, prepared_f32, batch_tile=16))
    assert out2.shape == (20, act_size)
    assert jnp.allclose(out2, ref2, atol=1e-5, rtol=1e-5)

    # --- lane-dense (padded) output option for tiny latency-bound batches ---
    out3 = jax.block_until_ready(
        model_actor_forward(x1, prepared_f32, lane_dense_output=True))
    assert out3.shape == (8, act_size)
    assert jnp.allclose(out3, ref1, atol=1e-5, rtol=1e-5)

    # --- default bf16 weight storage (f32 accumulate / elementwise) ---
    prepared_bf16 = prepare_actor_params(params)  # bf16 default
    out4 = jax.block_until_ready(model_actor_forward(x1, prepared_bf16))
    assert out4.shape == (8, act_size)
    assert jnp.allclose(out4, ref1, atol=5e-2, rtol=5e-2)

    out5 = jax.block_until_ready(
        model_actor_forward(x2, prepared_bf16, batch_tile=16))
    assert out5.shape == (20, act_size)
    assert jnp.allclose(out5, ref2, atol=5e-2, rtol=5e-2)

    print("KERNEL_OK")
</pallas_src>

<mosaic_0001>
module attributes {stable_mosaic.version = 11 : i64} {
  func.func @actor_mlp_kernel(%arg0: i32, %arg1: memref<8x32xf32, #tpu.memory_space<vmem>>, %arg2: memref<32x128xf32, #tpu.memory_space<vmem>>, %arg3: memref<128x128xf32, #tpu.memory_space<vmem>>, %arg4: memref<128x128xf32, #tpu.memory_space<vmem>>, %arg5: memref<3x128xf32, #tpu.memory_space<vmem>>, %arg6: memref<8x8xf32, #tpu.memory_space<vmem>>) attributes {dimension_semantics = [#tpu.dimension_semantics<parallel>], iteration_bounds = array<i64: 1>, scalar_prefetch = 0 : i64, scratch_operands = 0 : i64, tpu.core_type = #tpu.core_type<tc>, window_params = [{transform_indices = @transform_0, window_bounds = array<i64: 8, 32>}, {pipeline_mode = #tpu.pipeline_mode<synchronous>, transform_indices = @transform_1, window_bounds = array<i64: 32, 128>}, {pipeline_mode = #tpu.pipeline_mode<synchronous>, transform_indices = @transform_2, window_bounds = array<i64: 128, 128>}, {pipeline_mode = #tpu.pipeline_mode<synchronous>, transform_indices = @transform_3, window_bounds = array<i64: 128, 128>}, {pipeline_mode = #tpu.pipeline_mode<synchronous>, transform_indices = @transform_4, window_bounds = array<i64: 3, 128>}, {transform_indices = @transform_5, window_bounds = array<i64: 8, 8>}]} {
    %c0 = arith.constant 0 : index
    %c0_0 = arith.constant 0 : index
    %0 = vector.load %arg1[%c0, %c0_0] : memref<8x32xf32, #tpu.memory_space<vmem>>, vector<8x32xf32>
    %c0_1 = arith.constant 0 : index
    %c0_2 = arith.constant 0 : index
    %1 = vector.load %arg2[%c0_1, %c0_2] : memref<32x128xf32, #tpu.memory_space<vmem>>, vector<32x128xf32>
    %cst = arith.constant dense<0.000000e+00> : vector<8x128xf32>
    %2 = tpu.matmul %0, %1, %cst {dimension_numbers = #tpu.dot_dimension_numbers<[1], [0], [0], [1], [0, 0, 1, 1], [], []>} : vector<8x32xf32>, vector<32x128xf32>, vector<8x128xf32> -> vector<8x128xf32>
    %c0_3 = arith.constant 0 : index
    %c0_4 = arith.constant 0 : index
    %3 = vector.load %arg5[%c0_3, %c0_4] : memref<3x128xf32, #tpu.memory_space<vmem>>, vector<1x128xf32>
    %4 = vector.broadcast %3 : vector<1x128xf32> to vector<8x128xf32>
    %5 = arith.addf %2, %4 : vector<8x128xf32>
    %cst_5 = arith.constant 0.000000e+00 : f32
    %6 = vector.broadcast %cst_5 : f32 to vector<8x128xf32>
    %7 = arith.maximumf %5, %6 : vector<8x128xf32>
    %c0_6 = arith.constant 0 : index
    %c0_7 = arith.constant 0 : index
    %8 = vector.load %arg3[%c0_6, %c0_7] : memref<128x128xf32, #tpu.memory_space<vmem>>, vector<128x128xf32>
    %cst_8 = arith.constant dense<0.000000e+00> : vector<8x128xf32>
    %9 = tpu.matmul %7, %8, %cst_8 {dimension_numbers = #tpu.dot_dimension_numbers<[1], [0], [0], [1], [0, 0, 1, 1], [], []>} : vector<8x128xf32>, vector<128x128xf32>, vector<8x128xf32> -> vector<8x128xf32>
    %c1 = arith.constant 1 : index
    %c0_9 = arith.constant 0 : index
    %10 = vector.load %arg5[%c1, %c0_9] : memref<3x128xf32, #tpu.memory_space<vmem>>, vector<1x128xf32>
    %11 = vector.broadcast %10 : vector<1x128xf32> to vector<8x128xf32>
    %12 = arith.addf %9, %11 : vector<8x128xf32>
    %cst_10 = arith.constant 0.000000e+00 : f32
    %13 = vector.broadcast %cst_10 : f32 to vector<8x128xf32>
    %14 = arith.maximumf %12, %13 : vector<8x128xf32>
    %c0_11 = arith.constant 0 : index
    %c0_12 = arith.constant 0 : index
    %15 = vector.load %arg4[%c0_11, %c0_12] : memref<128x128xf32, #tpu.memory_space<vmem>>, vector<128x128xf32>
    %cst_13 = arith.constant dense<0.000000e+00> : vector<8x128xf32>
    %16 = tpu.matmul %14, %15, %cst_13 {dimension_numbers = #tpu.dot_dimension_numbers<[1], [0], [0], [1], [0, 0, 1, 1], [], []>} : vector<8x128xf32>, vector<128x128xf32>, vector<8x128xf32> -> vector<8x128xf32>
    %c2 = arith.constant 2 : index
    %c0_14 = arith.constant 0 : index
    %17 = vector.load %arg5[%c2, %c0_14] : memref<3x128xf32, #tpu.memory_space<vmem>>, vector<1x128xf32>
    %18 = vector.broadcast %17 : vector<1x128xf32> to vector<8x128xf32>
    %19 = arith.addf %16, %18 : vector<8x128xf32>
    %20 = math.tanh %19 : vector<8x128xf32>
    %21 = vector.extract_strided_slice %20 {offsets = [0, 0], sizes = [8, 8], strides = [1, 1]} : vector<8x128xf32> to vector<8x8xf32>
    %c0_15 = arith.constant 0 : index
    %c0_16 = arith.constant 0 : index
    %22 = vector.load %arg6[%c0_15, %c0_16] : memref<8x8xf32, #tpu.memory_space<vmem>>, vector<8x8xf32>
    tpu.vector_store %arg6[%c0_15, %c0_16], %21 {strides = array<i32>} : memref<8x8xf32, #tpu.memory_space<vmem>>, vector<8x8xf32>,
    return
  }
  func.func @transform_0(%arg0: i32) -> (i32, i32) {
    %c0_i32 = arith.constant 0 : i32
    %c0_i32_0 = arith.constant 0 : i32
    return %arg0, %c0_i32 : i32, i32
  }
  func.func @transform_1(%arg0: i32) -> (i32, i32) {
    %c0_i32 = arith.constant 0 : i32
    %c0_i32_0 = arith.constant 0 : i32
    %c0_i32_1 = arith.constant 0 : i32
    return %c0_i32, %c0_i32_0 : i32, i32
  }
  func.func @transform_2(%arg0: i32) -> (i32, i32) {
    %c0_i32 = arith.constant 0 : i32
    %c0_i32_0 = arith.constant 0 : i32
    %c0_i32_1 = arith.constant 0 : i32
    return %c0_i32, %c0_i32_0 : i32, i32
  }
  func.func @transform_3(%arg0: i32) -> (i32, i32) {
    %c0_i32 = arith.constant 0 : i32
    %c0_i32_0 = arith.constant 0 : i32
    %c0_i32_1 = arith.constant 0 : i32
    return %c0_i32, %c0_i32_0 : i32, i32
  }
  func.func @transform_4(%arg0: i32) -> (i32, i32) {
    %c0_i32 = arith.constant 0 : i32
    %c0_i32_0 = arith.constant 0 : i32
    %c0_i32_1 = arith.constant 0 : i32
    return %c0_i32, %c0_i32_0 : i32, i32
  }
  func.func @transform_5(%arg0: i32) -> (i32, i32) {
    %c0_i32 = arith.constant 0 : i32
    %c0_i32_0 = arith.constant 0 : i32
    return %arg0, %c0_i32 : i32, i32
  }
}

</mosaic_0001>

<llo_original>
// kernel: tpu_custom_call.1
$region0: #{tpu_custom_call.1}
  #allocation0 [shape = 'u32[]', space=smem, size = 0x4, offset = 0x4, fixed_abs, tag = 'smem constant byte address 0x4 - core index']
  #allocation1 [shape = 'u32[144,128]{1,0:T(1,128)}', space=vmem, size = 0x12000, scoped, tag = 'internal scratch']
  %s0 = inlined_call_operand.hbm [shape: f32[8,32], index: 0, kind: input, shape index: {}]
  %s1 = inlined_call_operand.hbm [shape: f32[32,128], index: 1, kind: input, shape index: {}]
  %s2 = inlined_call_operand.hbm [shape: f32[128,128], index: 2, kind: input, shape index: {}]
  %s3 = inlined_call_operand.hbm [shape: f32[128,128], index: 3, kind: input, shape index: {}]
  %s4 = inlined_call_operand.vmem [shape: f32[3,128], index: 4, kind: input, shape index: {}]
  %s5 = inlined_call_operand.hbm [shape: f32[8,8], index: 5, kind: output, shape index: {}]
  %s6 = sld [smem:[#allocation0]]
  $region46: #{tpu_custom_call.1} parent=0
    _
  %s8 = ssub.s32 1, %s6
  %s9 = scalar_select 0, %s8, %s6
  $region1: #{tpu_custom_call.1} parent=0
    #allocation2 [shape = 'u8[4096]{0}', space=vmem, size = 0x1000, scoped, tag = 'input window, operand 0, single buffered']
    #allocation3 [shape = 's32[1]{0}', space=sflag, size = 0x4, scoped, tag = 'scoped memory for tpu_custom_call.1']
    #allocation4 [shape = 's32[1]{0}', space=sflag, size = 0x4, scoped, tag = 'scoped memory for tpu_custom_call.1']
    #allocation5 [shape = 'u8[16384]{0}', space=vmem, size = 0x4000, scoped, tag = 'input window, operand 1, single buffered']
    #allocation6 [shape = 's32[1]{0}', space=sflag, size = 0x4, scoped, tag = 'scoped memory for tpu_custom_call.1']
    #allocation7 [shape = 'u8[65536]{0}', space=vmem, size = 0x10000, scoped, tag = 'input window, operand 2, single buffered']
    #allocation8 [shape = 'u8[65536]{0}', space=vmem, size = 0x10000, scoped, tag = 'input window, operand 3, single buffered']
    #allocation9 [shape = 's32[1]{0}', space=sflag, size = 0x4, scoped, tag = 'scoped memory for tpu_custom_call.1']
    #allocation10 [shape = 'u8[4096]{0}', space=vmem, size = 0x1000, scoped, tag = 'output window, operand 0, single buffered']
    %10 = vsyncpa [#allocation3], 0
    %11 = vsyncpa [#allocation6], 0
    %12 = vsyncpa [#allocation9], 0
    %13 = vsyncpa [#allocation4], 0
    // Predicated region
    $region2: #{tpu_custom_call.1} parent=1 // pred_check
      _
    $region3: #{tpu_custom_call.1} parent=1 // pred_check_branch
      %15 = sbr.rel (0) target = $region5
    $region4: #{tpu_custom_call.1} parent=1 // pred_region
      %s17 = ssub.s32 128, 128
      %18 = vsyncadd [#allocation3], %s17
      %s20 = sshll.u32 [#allocation2], 4
      %s21 = int_to_ptr.vmem [resolvable:$true] %s20
      %23 = dma.hbm_to_vmem [thread:$0]  %s0, 128, %s21, [#allocation3]
    $region5: #{tpu_custom_call.1} parent=1 // pred_fallthru
      _
    // Predicated region
    $region6: #{tpu_custom_call.1} parent=1 // pred_check
      _
    $region7: #{tpu_custom_call.1} parent=1 // pred_check_branch
      %25 = sbr.rel (0) target = $region9
    $region8: #{tpu_custom_call.1} parent=1 // pred_region
      %s27 = ssub.s32 512, 512
      %28 = vsyncadd [#allocation6], %s27
      %s29 = sshll.u32 [#allocation5], 4
      %s30 = int_to_ptr.vmem [resolvable:$true] %s29
      %35 = dma.hbm_to_vmem [thread:$0]  %s1, 512, %s30, [#allocation6], 128, 128, 8
    $region9: #{tpu_custom_call.1} parent=1 // pred_fallthru
      _
    // Predicated region
    $region10: #{tpu_custom_call.1} parent=1 // pred_check
      _
    $region11: #{tpu_custom_call.1} parent=1 // pred_check_branch
      %37 = sbr.rel (0) target = $region13
    $region12: #{tpu_custom_call.1} parent=1 // pred_region
      %s39 = ssub.s32 2048, 2048
      %40 = vsyncadd [#allocation6], %s39
      %s41 = sshll.u32 [#allocation7], 4
      %s42 = int_to_ptr.vmem [resolvable:$true] %s41
      %47 = dma.hbm_to_vmem [thread:$0]  %s2, 2048, %s42, [#allocation6], 128, 128, 8
    $region13: #{tpu_custom_call.1} parent=1 // pred_fallthru
      _
    // Predicated region
    $region14: #{tpu_custom_call.1} parent=1 // pred_check
      _
    $region15: #{tpu_custom_call.1} parent=1 // pred_check_branch
      %49 = sbr.rel (0) target = $region17
    $region16: #{tpu_custom_call.1} parent=1 // pred_region
      %s51 = ssub.s32 2048, 2048
      %52 = vsyncadd [#allocation9], %s51
      %s53 = sshll.u32 [#allocation8], 4
      %s54 = int_to_ptr.vmem [resolvable:$true] %s53
      %59 = dma.hbm_to_vmem [thread:$0]  %s3, 2048, %s54, [#allocation9], 128, 128, 8
    $region17: #{tpu_custom_call.1} parent=1 // pred_fallthru
      _
    // Predicated region
    $region18: #{tpu_custom_call.1} parent=1 // pred_check
      _
    $region19: #{tpu_custom_call.1} parent=1 // pred_check_branch
      %61 = sbr.rel (0) target = $region21
    $region20: #{tpu_custom_call.1} parent=1 // pred_region
      _
    $region21: #{tpu_custom_call.1} parent=1 // pred_fallthru
      _
    // Predicated region
    $region22: #{tpu_custom_call.1} parent=1 // pred_check
      _
    $region23: #{tpu_custom_call.1} parent=1 // pred_check_branch
      %63 = sbr.rel (0) target = $region25
    $region24: #{tpu_custom_call.1} parent=1 // pred_region
      %64 = dma.done [#allocation3], 128
    $region25: #{tpu_custom_call.1} parent=1 // pred_fallthru
      _
    // Predicated region
    $region26: #{tpu_custom_call.1} parent=1 // pred_check
      _
    $region27: #{tpu_custom_call.1} parent=1 // pred_check_branch
      %66 = sbr.rel (0) target = $region29
    $region28: #{tpu_custom_call.1} parent=1 // pred_region
      %67 = dma.done [#allocation6], 512
    $region29: #{tpu_custom_call.1} parent=1 // pred_fallthru
      _
    // Predicated region
    $region30: #{tpu_custom_call.1} parent=1 // pred_check
      _
    $region31: #{tpu_custom_call.1} parent=1 // pred_check_branch
      %69 = sbr.rel (0) target = $region33
    $region32: #{tpu_custom_call.1} parent=1 // pred_region
      %70 = dma.done [#allocation6], 2048
    $region33: #{tpu_custom_call.1} parent=1 // pred_fallthru
      _
    // Predicated region
    $region34: #{tpu_custom_call.1} parent=1 // pred_check
      _
    $region35: #{tpu_custom_call.1} parent=1 // pred_check_branch
      %72 = sbr.rel (0) target = $region37
    $region36: #{tpu_custom_call.1} parent=1 // pred_region
      %73 = dma.done [#allocation9], 2048
    $region37: #{tpu_custom_call.1} parent=1 // pred_fallthru
      _
    %v74 = vld [vmem:[#allocation2] sm:$0xff]
    %v75 = vld [vmem:[#allocation5] sm:$0xff]
    %v76 = vld [vmem:[#allocation5 + $0x8] sm:$0xff]
    %v77 = vld [vmem:[#allocation5 + $0x10] sm:$0xff]
    %v78 = vld [vmem:[#allocation5 + $0x18] sm:$0xff]
    %v79 = vld [vmem:[%s4] sm:$0x1]
    %v80 = vlaneseq
    %v81 = vshrl.u32 %v80, 7
    %v82 = vsub.s32 0, %v81
    %v83 = vrot.slane %v79, %v82
    %vm84 = vcmask 261120
    %v86 = vsel %vm84, %v74, 0
    %88 = vmatprep.subr.mxu0 0.0
    %89 = vmatpush1.msra.mxu0 0.0
    %90 = vmatprep.subr.mxu0 0.0
    %91 = vmatpush1.msra.mxu0 0.0
    %92 = vmatprep.subr.mxu0 0.0
    %93 = vmatpush1.msra.mxu0 0.0
    %94 = vmatprep.subr.mxu0 0.0
    %95 = vmatpush1.msra.mxu0 0.0
    %96 = vmatprep.subr.mxu0 0.0
    %97 = vmatpush1.msra.mxu0 0.0
    %98 = vmatprep.subr.mxu0 0.0
    %99 = vmatpush1.msra.mxu0 0.0
    %100 = vmatprep.subr.mxu0 0.0
    %101 = vmatpush1.msra.mxu0 0.0
    %102 = vmatprep.subr.mxu0 0.0
    %103 = vmatpush1.msra.mxu0 0.0
    %104 = vmatprep.subr.mxu0 0.0
    %105 = vmatpush1.msra.mxu0 0.0
    %106 = vmatprep.subr.mxu0 0.0
    %107 = vmatpush1.msra.mxu0 0.0
    %108 = vmatprep.subr.mxu0 0.0
    %109 = vmatpush1.msra.mxu0 0.0
    %110 = vmatprep.subr.mxu0 0.0
    %111 = vmatpush1.msra.mxu0 0.0
    %112 = vmatprep.subr.mxu0 0.0
    %113 = vmatpush1.msra.mxu0 %v78
    %114 = vmatprep.subr.mxu0 0.0
    %115 = vmatpush1.msra.mxu0 %v77
    %116 = vmatprep.subr.mxu0 0.0
    %117 = vmatpush1.msra.mxu0 %v76
    %118 = vmatprep.subr.mxu0 0.0
    %119 = vmatpush1.msra.mxu0 %v75
    %120 = vmatprep.subr.mxu0 0.0
    %121 = vmatpush2.msra.mxu0 0.0
    %122 = vmatprep.subr.mxu0 0.0
    %123 = vmatpush2.msra.mxu0 0.0
    %124 = vmatprep.subr.mxu0 0.0
    %125 = vmatpush2.msra.mxu0 0.0
    %126 = vmatprep.subr.mxu0 0.0
    %127 = vmatpush2.msra.mxu0 0.0
    %128 = vmatprep.subr.mxu0 0.0
    %129 = vmatpush2.msra.mxu0 0.0
    %130 = vmatprep.subr.mxu0 0.0
    %131 = vmatpush2.msra.mxu0 0.0
    %132 = vmatprep.subr.mxu0 0.0
    %133 = vmatpush2.msra.mxu0 0.0
    %134 = vmatprep.subr.mxu0 0.0
    %135 = vmatpush2.msra.mxu0 0.0
    %136 = vmatprep.subr.mxu0 0.0
    %137 = vmatpush2.msra.mxu0 0.0
    %138 = vmatprep.subr.mxu0 0.0
    %139 = vmatpush2.msra.mxu0 0.0
    %140 = vmatprep.subr.mxu0 0.0
    %141 = vmatpush2.msra.mxu0 0.0
    %142 = vmatprep.subr.mxu0 0.0
    %143 = vmatpush2.msra.mxu0 0.0
    %144 = vmatprep.subr.mxu0 0.0
    %145 = vmatpush2.msra.mxu0 0.0
    %146 = vmatprep.subr.mxu0 0.0
    %147 = vmatpush2.msra.mxu0 0.0
    %148 = vmatprep.subr.mxu0 0.0
    %149 = vmatpush2.msra.mxu0 0.0
    %150 = vmatprep.subr.mxu0 0.0
    %151 = vmatpush2.msra.mxu0 0.0
    %152 = vmatprep.mubr.f32.mxu0 0.0
    %153 = vmatmul.mubr.f32.gmra.mxu0 %v86
    %v154 = vpop.f32.mrf.mxu0
    %v155 = vadd.f32 %v83, %v154
    %v156 = vpop.f32.mrf.mxu0
    %157 = vdwg.mxu0
    %v158 = vmax.f32 %v155, 0.0
    %v159 = vld [vmem:[#allocation7] sm:$0xff]
    %v160 = vld [vmem:[#allocation7 + $0x8] sm:$0xff]
    %v161 = vld [vmem:[#allocation7 + $0x10] sm:$0xff]
    %v162 = vld [vmem:[#allocation7 + $0x18] sm:$0xff]
    %v163 = vld [vmem:[#allocation7 + $0x20] sm:$0xff]
    %v164 = vld [vmem:[#allocation7 + $0x28] sm:$0xff]
    %v165 = vld [vmem:[#allocation7 + $0x30] sm:$0xff]
    %v166 = vld [vmem:[#allocation7 + $0x38] sm:$0xff]
    %v167 = vld [vmem:[#allocation7 + $0x40] sm:$0xff]
    %v168 = vld [vmem:[#allocation7 + $0x48] sm:$0xff]
    %v169 = vld [vmem:[#allocation7 + $0x50] sm:$0xff]
    %v170 = vld [vmem:[#allocation7 + $0x58] sm:$0xff]
    %v171 = vld [vmem:[#allocation7 + $0x60] sm:$0xff]
    %v172 = vld [vmem:[#allocation7 + $0x68] sm:$0xff]
    %v173 = vld [vmem:[#allocation7 + $0x70] sm:$0xff]
    %v174 = vld [vmem:[#allocation7 + $0x78] sm:$0xff]
    %v175 = vld [vmem:[%s4 + $0x1] sm:$0x1]
    %v176 = vlaneseq
    %v177 = vshrl.u32 %v176, 7
    %v178 = vsub.s32 0, %v177
    %v179 = vrot.slane %v175, %v178
    %180 = vmatprep.subr.mxu0 0.0
    %181 = vmatpush1.msra.mxu0 %v174
    %182 = vmatprep.subr.mxu0 0.0
    %183 = vmatpush1.msra.mxu0 %v173
    %184 = vmatprep.subr.mxu0 0.0
    %185 = vmatpush1.msra.mxu0 %v172
    %186 = vmatprep.subr.mxu0 0.0
    %187 = vmatpush1.msra.mxu0 %v171
    %188 = vmatprep.subr.mxu0 0.0
    %189 = vmatpush1.msra.mxu0 %v170
    %190 = vmatprep.subr.mxu0 0.0
    %191 = vmatpush1.msra.mxu0 %v169
    %192 = vmatprep.subr.mxu0 0.0
    %193 = vmatpush1.msra.mxu0 %v168
    %194 = vmatprep.subr.mxu0 0.0
    %195 = vmatpush1.msra.mxu0 %v167
    %196 = vmatprep.subr.mxu0 0.0
    %197 = vmatpush1.msra.mxu0 %v166
    %198 = vmatprep.subr.mxu0 0.0
    %199 = vmatpush1.msra.mxu0 %v165
    %200 = vmatprep.subr.mxu0 0.0
    %201 = vmatpush1.msra.mxu0 %v164
    %202 = vmatprep.subr.mxu0 0.0
    %203 = vmatpush1.msra.mxu0 %v163
    %204 = vmatprep.subr.mxu0 0.0
    %205 = vmatpush1.msra.mxu0 %v162
    %206 = vmatprep.subr.mxu0 0.0
    %207 = vmatpush1.msra.mxu0 %v161
    %208 = vmatprep.subr.mxu0 0.0
    %209 = vmatpush1.msra.mxu0 %v160
    %210 = vmatprep.subr.mxu0 0.0
    %211 = vmatpush1.msra.mxu0 %v159
    %212 = vmatprep.subr.mxu0 0.0
    %213 = vmatpush2.msra.mxu0 0.0
    %214 = vmatprep.subr.mxu0 0.0
    %215 = vmatpush2.msra.mxu0 0.0
    %216 = vmatprep.subr.mxu0 0.0
    %217 = vmatpush2.msra.mxu0 0.0
    %218 = vmatprep.subr.mxu0 0.0
    %219 = vmatpush2.msra.mxu0 0.0
    %220 = vmatprep.subr.mxu0 0.0
    %221 = vmatpush2.msra.mxu0 0.0
    %222 = vmatprep.subr.mxu0 0.0
    %223 = vmatpush2.msra.mxu0 0.0
    %224 = vmatprep.subr.mxu0 0.0
    %225 = vmatpush2.msra.mxu0 0.0
    %226 = vmatprep.subr.mxu0 0.0
    %227 = vmatpush2.msra.mxu0 0.0
    %228 = vmatprep.subr.mxu0 0.0
    %229 = vmatpush2.msra.mxu0 0.0
    %230 = vmatprep.subr.mxu0 0.0
    %231 = vmatpush2.msra.mxu0 0.0
    %232 = vmatprep.subr.mxu0 0.0
    %233 = vmatpush2.msra.mxu0 0.0
    %234 = vmatprep.subr.mxu0 0.0
    %235 = vmatpush2.msra.mxu0 0.0
    %236 = vmatprep.subr.mxu0 0.0
    %237 = vmatpush2.msra.mxu0 0.0
    %238 = vmatprep.subr.mxu0 0.0
    %239 = vmatpush2.msra.mxu0 0.0
    %240 = vmatprep.subr.mxu0 0.0
    %241 = vmatpush2.msra.mxu0 0.0
    %242 = vmatprep.subr.mxu0 0.0
    %243 = vmatpush2.msra.mxu0 0.0
    %244 = vmatprep.mubr.f32.mxu0 0.0
    %245 = vmatmul.mubr.f32.gmra.mxu0 %v158
    %v246 = vpop.f32.mrf.mxu0
    %v247 = vadd.f32 %v179, %v246
    %v248 = vpop.f32.mrf.mxu0
    %249 = vdwg.mxu0
    %v250 = vmax.f32 %v247, 0.0
    %v251 = vld [vmem:[#allocation8] sm:$0xff]
    %v252 = vld [vmem:[#allocation8 + $0x8] sm:$0xff]
    %v253 = vld [vmem:[#allocation8 + $0x10] sm:$0xff]
    %v254 = vld [vmem:[#allocation8 + $0x18] sm:$0xff]
    %v255 = vld [vmem:[#allocation8 + $0x20] sm:$0xff]
    %v256 = vld [vmem:[#allocation8 + $0x28] sm:$0xff]
    %v257 = vld [vmem:[#allocation8 + $0x30] sm:$0xff]
    %v258 = vld [vmem:[#allocation8 + $0x38] sm:$0xff]
    %v259 = vld [vmem:[#allocation8 + $0x40] sm:$0xff]
    %v260 = vld [vmem:[#allocation8 + $0x48] sm:$0xff]
    %v261 = vld [vmem:[#allocation8 + $0x50] sm:$0xff]
    %v262 = vld [vmem:[#allocation8 + $0x58] sm:$0xff]
    %v263 = vld [vmem:[#allocation8 + $0x60] sm:$0xff]
    %v264 = vld [vmem:[#allocation8 + $0x68] sm:$0xff]
    %v265 = vld [vmem:[#allocation8 + $0x70] sm:$0xff]
    %v266 = vld [vmem:[#allocation8 + $0x78] sm:$0xff]
    %v267 = vld [vmem:[%s4 + $0x2] sm:$0x1]
    %v268 = vlaneseq
    %v269 = vshrl.u32 %v268, 7
    %v270 = vsub.s32 0, %v269
    %v271 = vrot.slane %v267, %v270
    %272 = vmatprep.subr.mxu0 0.0
    %273 = vmatpush1.msra.mxu0 %v266
    %274 = vmatprep.subr.mxu0 0.0
    %275 = vmatpush1.msra.mxu0 %v265
    %276 = vmatprep.subr.mxu0 0.0
    %277 = vmatpush1.msra.mxu0 %v264
    %278 = vmatprep.subr.mxu0 0.0
    %279 = vmatpush1.msra.mxu0 %v263
    %280 = vmatprep.subr.mxu0 0.0
    %281 = vmatpush1.msra.mxu0 %v262
    %282 = vmatprep.subr.mxu0 0.0
    %283 = vmatpush1.msra.mxu0 %v261
    %284 = vmatprep.subr.mxu0 0.0
    %285 = vmatpush1.msra.mxu0 %v260
    %286 = vmatprep.subr.mxu0 0.0
    %287 = vmatpush1.msra.mxu0 %v259
    %288 = vmatprep.subr.mxu0 0.0
    %289 = vmatpush1.msra.mxu0 %v258
    %290 = vmatprep.subr.mxu0 0.0
    %291 = vmatpush1.msra.mxu0 %v257
    %292 = vmatprep.subr.mxu0 0.0
    %293 = vmatpush1.msra.mxu0 %v256
    %294 = vmatprep.subr.mxu0 0.0
    %295 = vmatpush1.msra.mxu0 %v255
    %296 = vmatprep.subr.mxu0 0.0
    %297 = vmatpush1.msra.mxu0 %v254
    %298 = vmatprep.subr.mxu0 0.0
    %299 = vmatpush1.msra.mxu0 %v253
    %300 = vmatprep.subr.mxu0 0.0
    %301 = vmatpush1.msra.mxu0 %v252
    %302 = vmatprep.subr.mxu0 0.0
    %303 = vmatpush1.msra.mxu0 %v251
    %304 = vmatprep.subr.mxu0 0.0
    %305 = vmatpush2.msra.mxu0 0.0
    %306 = vmatprep.subr.mxu0 0.0
    %307 = vmatpush2.msra.mxu0 0.0
    %308 = vmatprep.subr.mxu0 0.0
    %309 = vmatpush2.msra.mxu0 0.0
    %310 = vmatprep.subr.mxu0 0.0
    %311 = vmatpush2.msra.mxu0 0.0
    %312 = vmatprep.subr.mxu0 0.0
    %313 = vmatpush2.msra.mxu0 0.0
    %314 = vmatprep.subr.mxu0 0.0
    %315 = vmatpush2.msra.mxu0 0.0
    %316 = vmatprep.subr.mxu0 0.0
    %317 = vmatpush2.msra.mxu0 0.0
    %318 = vmatprep.subr.mxu0 0.0
    %319 = vmatpush2.msra.mxu0 0.0
    %320 = vmatprep.subr.mxu0 0.0
    %321 = vmatpush2.msra.mxu0 0.0
    %322 = vmatprep.subr.mxu0 0.0
    %323 = vmatpush2.msra.mxu0 0.0
    %324 = vmatprep.subr.mxu0 0.0
    %325 = vmatpush2.msra.mxu0 0.0
    %326 = vmatprep.subr.mxu0 0.0
    %327 = vmatpush2.msra.mxu0 0.0
    %328 = vmatprep.subr.mxu0 0.0
    %329 = vmatpush2.msra.mxu0 0.0
    %330 = vmatprep.subr.mxu0 0.0
    %331 = vmatpush2.msra.mxu0 0.0
    %332 = vmatprep.subr.mxu0 0.0
    %333 = vmatpush2.msra.mxu0 0.0
    %334 = vmatprep.subr.mxu0 0.0
    %335 = vmatpush2.msra.mxu0 0.0
    %336 = vmatprep.mubr.f32.mxu0 0.0
    %337 = vmatmul.mubr.f32.gmra.mxu0 %v250
    %v338 = vpop.f32.mrf.mxu0
    %v339 = vadd.f32 %v271, %v338
    %v340 = vpop.f32.mrf.mxu0
    %341 = vdwg.mxu0
    %v342 = vtanh.pop %v339
    %vm343 = vcmask 64512
    %344 = vst.msk [vmem:[#allocation10] sm:$0xff] %vm343, %v342
    // Predicated region
    $region38: #{tpu_custom_call.1} parent=1 // pred_check
      _
    $region39: #{tpu_custom_call.1} parent=1 // pred_check_branch
      %346 = sbr.rel (0) target = $region41
    $region40: #{tpu_custom_call.1} parent=1 // pred_region
      %s348 = ssub.s32 128, 128
      %349 = vsyncadd [#allocation4], %s348
      %s351 = sshll.u32 [#allocation10], 4
      %s352 = int_to_ptr.vmem [resolvable:$true] %s351
      %354 = dma.vmem_to_hbm [thread:$0]  %s352, 128, %s5, [#allocation4]
    $region41: #{tpu_custom_call.1} parent=1 // pred_fallthru
      _
    // Predicated region
    $region42: #{tpu_custom_call.1} parent=1 // pred_check
      _
    $region43: #{tpu_custom_call.1} parent=1 // pred_check_branch
      %356 = sbr.rel (0) target = $region45
    $region44: #{tpu_custom_call.1} parent=1 // pred_region
      %357 = dma.done [#allocation4], 128
    $region45: #{tpu_custom_call.1} parent=1 // pred_fallthru
      _
    %358 = vsyncpa [#allocation3], 1
    %359 = vsyncpa [#allocation6], 1
    %360 = vsyncpa [#allocation9], 1
    %361 = vsyncpa [#allocation4], 1

</llo_original>
